<compile_context>
chip_gen: v5e
topology: v5e:2x2
jax: 0.10.0
libtpu: 0.0.40
codegen_flags: <defaults>
</compile_context>

<pallas_src>
import functools

import jax
import jax.numpy as jnp
from jax.experimental import pallas as pl
from jax.experimental.pallas import tpu as pltpu


def _round_up(a, b):
    return (a + b - 1) // b * b


def _vmem_config():
    """Generation-aware (tile_budget_bytes, vmem_limit_bytes)."""
    cap = 128 * 1024 * 1024
    try:
        info = pltpu.get_tpu_info()
        cap = int(getattr(info, "vmem_capacity_bytes", cap)) or cap
    except Exception:
        pass
    if cap <= 64 * 1024 * 1024:                      # v7x: 64 MiB per TensorCore
        return 18 * 1024 * 1024, 32 * 1024 * 1024
    return 40 * 1024 * 1024, 64 * 1024 * 1024        # v5e / v6e: 128 MiB


def _choose_tiles(nt, v, itemsize, budget_bytes, max_rows):
    """Pick (tile_rows, tile_v).

    Budget model per tile element:
      2 * itemsize   (double-buffered native x tile)
    + 3 * 4          (~3 live full-tile f32 temporaries: cast, exp, selects)
    """
    per_elem = 2 * itemsize + 3 * 4
    max_elems = max(budget_bytes // per_elem, 8 * 128)

    # Row tile: multiple of 8, capped so the "parallel" row axis has >= 2
    # chunks (keeps both v7x TensorCores busy; harmless on v5e/v6e).
    tile_rows = min(max_rows, _round_up(nt, 8))
    if nt > 8:
        tile_rows = min(tile_rows, _round_up(pl.cdiv(nt, 2), 8))
    tile_rows = max(8, (tile_rows // 8) * 8)

    def tv_for(tr):
        cols = max_elems // tr
        if v <= cols:
            return v                              # whole vocab in one chunk
        tv = max(128, (cols // 128) * 128)
        # Prefer a tile_v that divides V (skips the lane mask entirely) as
        # long as it does not cost more than ~25% of the tile width.
        lo = max(128, (tv * 3 // 4) // 128 * 128)
        for cand in range(tv, lo - 1, -128):
            if v % cand == 0:
                return cand
        return tv

    tile_v = tv_for(tile_rows)
    # If the vocab chunk came out narrow, trade rows for vocab width, but
    # keep tile_rows >= 256 (HBM-roofline knee; v5e guidance).
    while tile_v != v and tile_v < 1024 and tile_rows > 256:
        tile_rows = max(256, (tile_rows // 2 // 8) * 8)
        tile_v = tv_for(tile_rows)
    return tile_rows, tile_v


def _tsl_kernel(x_ref, y_ref, m_ref, o_ref, m_sc, l_sc, g_sc, *,
                nt, v, mask_cols):
    """Grid = (row_chunks [parallel], vocab_chunks [arbitrary])."""
    ri = pl.program_id(0)
    vi = pl.program_id(1)
    nv = pl.num_programs(1)
    tm, tv = x_ref.shape

    # Reset the per-row online-LSE state at the start of each row-chunk.
    @pl.when(vi == 0)
    def _():
        m_sc[...] = jnp.full_like(m_sc, -jnp.inf)
        l_sc[...] = jnp.zeros_like(l_sc)
        g_sc[...] = jnp.zeros_like(g_sc)

    # Chunk-local column index (vi-independent: no per-step global rebuild).
    col_local = jax.lax.broadcasted_iota(jnp.int32, (tm, tv), 1)

    x = x_ref[...].astype(jnp.float32)                          # (TM, TV)
    if mask_cols:
        # Only compiled in when V % tile_v != 0: padded lanes of the last
        # vocab chunk must not contribute to the logsumexp.
        n_valid = v - vi * tv            # > tv on interior chunks => no-op
        x = jnp.where(col_local < n_valid, x, -jnp.inf)

    # Gather term: x[row, y[row]] lives in exactly one vocab chunk.
    y_local = y_ref[...] - vi * tv                              # (TM, 1)
    g_sc[...] += jnp.sum(jnp.where(col_local == y_local, x, 0.0),
                         axis=1, keepdims=True)

    # Online logsumexp across vocab chunks.
    m_old = m_sc[...]
    m_new = jnp.maximum(m_old, jnp.max(x, axis=1, keepdims=True))
    l_sc[...] = (l_sc[...] * jnp.exp(m_old - m_new)
                 + jnp.sum(jnp.exp(x - m_new), axis=1, keepdims=True))
    m_sc[...] = m_new

    # Finalize this row-chunk: masked NLL per row, reduced to one partial sum.
    @pl.when(vi == nv - 1)
    def _():
        row = ri * tm + jax.lax.broadcasted_iota(jnp.int32, (tm, 1), 0)
        msk = m_ref[...].astype(jnp.float32)
        nll = msk * (m_sc[...] + jnp.log(l_sc[...]) - g_sc[...])
        # Rows past NT are padding reads (garbage -> possibly NaN/Inf in the
        # per-row state); zero them NaN-safely.  No per-chunk row mask needed.
        nll = jnp.where(row < nt, nll, 0.0)
        o_ref[0] = jnp.sum(nll, keepdims=True)


@functools.partial(jax.jit,
                   static_argnames=("max_tile_rows", "tile_budget_bytes"))
def temporal_softmax_loss(x, y, mask, max_tile_rows=512,
                          tile_budget_bytes=None):
    """x: (N, T, V); y: (N, T) int; mask: (N, T) bool. Returns scalar loss."""
    N, T, V = x.shape
    NT = N * T

    x_flat = x.reshape(NT, V)                       # native dtype, free reshape
    y_flat = y.reshape(NT, 1).astype(jnp.int32)
    m_flat = mask.reshape(NT, 1).astype(jnp.float32)

    auto_budget, vmem_limit = _vmem_config()
    budget = auto_budget if tile_budget_bytes is None else tile_budget_bytes

    tile_rows, tile_v = _choose_tiles(NT, V, x_flat.dtype.itemsize,
                                      budget, max_tile_rows)
    n_row = pl.cdiv(NT, tile_rows)
    n_v = pl.cdiv(V, tile_v)
    mask_cols = (V % tile_v) != 0

    kernel = functools.partial(_tsl_kernel, nt=NT, v=V, mask_cols=mask_cols)

    partials = pl.pallas_call(
        kernel,
        out_shape=jax.ShapeDtypeStruct((n_row, 1, 1), jnp.float32),
        grid_spec=pltpu.PrefetchScalarGridSpec(
            num_scalar_prefetch=0,
            grid=(n_row, n_v),
            in_specs=[
                pl.BlockSpec((tile_rows, tile_v), lambda i, j: (i, j)),
                pl.BlockSpec((tile_rows, 1), lambda i, j: (i, 0)),
                pl.BlockSpec((tile_rows, 1), lambda i, j: (i, 0)),
            ],
            out_specs=pl.BlockSpec((1, 1, 1), lambda i, j: (i, 0, 0)),
            scratch_shapes=[pltpu.VMEM((tile_rows, 1), jnp.float32)] * 3,
        ),
        compiler_params=pltpu.CompilerParams(
            dimension_semantics=("parallel", "arbitrary"),
            vmem_limit_bytes=vmem_limit,
        ),
    )(x_flat, y_flat, m_flat)

    return jnp.sum(partials) / jnp.float32(N)


def _reference_loss(x, y, mask):
    """Pure-JAX reference mirroring the PyTorch forward."""
    N, T, V = x.shape
    xf = x.reshape(N * T, V).astype(jnp.float32)
    yf = y.reshape(N * T)
    mf = mask.reshape(N * T).astype(jnp.float32)
    shifted = xf - xf.max(axis=1, keepdims=True)
    logp = shifted - jnp.log(jnp.sum(jnp.exp(shifted), axis=1, keepdims=True))
    picked = jnp.take_along_axis(logp, yf[:, None], axis=1)[:, 0]
    return -jnp.sum(mf * picked) / N


if __name__ == "__main__":
    key = jax.random.PRNGKey(0)
    k1, k2, k3, k4, k5, k6, k7, k8, k9 = jax.random.split(key, 9)

    # Test 1: small shapes consistent with the module (N, T, V), f32.
    N, T, V = 2, 8, 32
    x = jax.random.normal(k1, (N, T, V), dtype=jnp.float32)
    y = jax.random.randint(k2, (N, T), 0, V, dtype=jnp.int32)
    mask = jax.random.bernoulli(k3, 0.8, (N, T))
    loss = jax.block_until_ready(temporal_softmax_loss(x, y, mask))
    ref = _reference_loss(x, y, mask)
    assert jnp.allclose(loss, ref, rtol=1e-5, atol=1e-5), (loss, ref)

    # Test 2: non-divisible shapes + bf16 scores; tiny tile budget forces row
    # chunking, vocab chunking (online LSE), lane masking and OOB-row padding.
    N2, T2, V2 = 3, 5, 200
    x2 = jax.random.normal(k4, (N2, T2, V2), dtype=jnp.float32).astype(jnp.bfloat16)
    y2 = jax.random.randint(k5, (N2, T2), 0, V2, dtype=jnp.int32)
    mask2 = jax.random.bernoulli(k6, 0.7, (N2, T2))
    loss2 = jax.block_until_ready(
        temporal_softmax_loss(x2, y2, mask2, max_tile_rows=8,
                              tile_budget_bytes=4096))
    ref2 = _reference_loss(x2, y2, mask2)
    assert jnp.allclose(loss2, ref2, rtol=1e-4, atol=1e-4), (loss2, ref2)

    # Test 3: moderate bf16 case on the auto (generation-aware) tiling path:
    # whole-vocab tiles (no lane mask compiled in), >= 2 row chunks (megacore).
    N3, T3, V3 = 4, 128, 1024
    x3 = jax.random.normal(k7, (N3, T3, V3), dtype=jnp.float32).astype(jnp.bfloat16)
    y3 = jax.random.randint(k8, (N3, T3), 0, V3, dtype=jnp.int32)
    mask3 = jax.random.bernoulli(k9, 0.9, (N3, T3))
    loss3 = jax.block_until_ready(temporal_softmax_loss(x3, y3, mask3))
    ref3 = _reference_loss(x3, y3, mask3)
    assert jnp.allclose(loss3, ref3, rtol=2e-4, atol=1e-3), (loss3, ref3)

    print("KERNEL_OK")
</pallas_src>

<mosaic_0001>
module attributes {stable_mosaic.version = 11 : i64} {
  func.func @_tsl_kernel(%arg0: i32, %arg1: i32, %arg2: memref<8x32xf32, #tpu.memory_space<vmem>>, %arg3: memref<8x1xi32, #tpu.memory_space<vmem>>, %arg4: memref<8x1xf32, #tpu.memory_space<vmem>>, %arg5: memref<1x1x1xf32, #tpu.memory_space<vmem>>, %arg6: memref<8x1xf32, #tpu.memory_space<vmem>>, %arg7: memref<8x1xf32, #tpu.memory_space<vmem>>, %arg8: memref<8x1xf32, #tpu.memory_space<vmem>>) attributes {dimension_semantics = [#tpu.dimension_semantics<parallel>, #tpu.dimension_semantics<arbitrary>], iteration_bounds = array<i64: 2, 1>, scalar_prefetch = 0 : i64, scratch_operands = 3 : i64, tpu.core_type = #tpu.core_type<tc>, window_params = [{transform_indices = @transform_0, window_bounds = array<i64: 8, 32>}, {transform_indices = @transform_1, window_bounds = array<i64: 8, 1>}, {transform_indices = @transform_2, window_bounds = array<i64: 8, 1>}, {transform_indices = @transform_3, window_bounds = array<i64: 1, 1, 1>}]} {
    %c0_i32 = arith.constant 0 : i32
    %0 = arith.cmpi eq, %arg1, %c0_i32 : i32
    %1 = arith.extui %0 : i1 to i32
    %c0_i32_0 = arith.constant 0 : i32
    %2 = arith.cmpi ne, %1, %c0_i32_0 : i32
    scf.if %2 {
      %cst_21 = arith.constant 0xFF800000 : f32
      %37 = vector.broadcast %cst_21 : f32 to vector<8x1xf32>
      %c0_22 = arith.constant 0 : index
      %c0_23 = arith.constant 0 : index
      %38 = vector.load %arg6[%c0_22, %c0_23] : memref<8x1xf32, #tpu.memory_space<vmem>>, vector<8x1xf32>
      tpu.vector_store %arg6[%c0_22, %c0_23], %37 {strides = array<i32>} : memref<8x1xf32, #tpu.memory_space<vmem>>, vector<8x1xf32>,
      %cst_24 = arith.constant 0.000000e+00 : f32
      %39 = vector.broadcast %cst_24 : f32 to vector<8x1xf32>
      %c0_25 = arith.constant 0 : index
      %c0_26 = arith.constant 0 : index
      %40 = vector.load %arg7[%c0_25, %c0_26] : memref<8x1xf32, #tpu.memory_space<vmem>>, vector<8x1xf32>
      tpu.vector_store %arg7[%c0_25, %c0_26], %39 {strides = array<i32>} : memref<8x1xf32, #tpu.memory_space<vmem>>, vector<8x1xf32>,
      %cst_27 = arith.constant 0.000000e+00 : f32
      %41 = vector.broadcast %cst_27 : f32 to vector<8x1xf32>
      %c0_28 = arith.constant 0 : index
      %c0_29 = arith.constant 0 : index
      %42 = vector.load %arg8[%c0_28, %c0_29] : memref<8x1xf32, #tpu.memory_space<vmem>>, vector<8x1xf32>
      tpu.vector_store %arg8[%c0_28, %c0_29], %41 {strides = array<i32>} : memref<8x1xf32, #tpu.memory_space<vmem>>, vector<8x1xf32>,
    } else {
    }
    %3 = tpu.iota {dimensions = array<i32: 1>} : vector<8x32xi32>
    %c0 = arith.constant 0 : index
    %c0_1 = arith.constant 0 : index
    %4 = vector.load %arg2[%c0, %c0_1] : memref<8x32xf32, #tpu.memory_space<vmem>>, vector<8x32xf32>
    %c0_2 = arith.constant 0 : index
    %c0_3 = arith.constant 0 : index
    %5 = vector.load %arg3[%c0_2, %c0_3] : memref<8x1xi32, #tpu.memory_space<vmem>>, vector<8x1xi32>
    %c32_i32 = arith.constant 32 : i32
    %6 = arith.muli %arg1, %c32_i32 : i32
    %7 = vector.broadcast %6 : i32 to vector<8x1xi32>
    %8 = arith.subi %5, %7 : vector<8x1xi32>
    %c0_4 = arith.constant 0 : index
    %c0_5 = arith.constant 0 : index
    %9 = vector.load %arg8[%c0_4, %c0_5] : memref<8x1xf32, #tpu.memory_space<vmem>>, vector<8x1xf32>
    %10 = vector.broadcast %8 : vector<8x1xi32> to vector<8x32xi32>
    %11 = arith.cmpi eq, %3, %10 : vector<8x32xi32>
    %cst = arith.constant 0.000000e+00 : f32
    %12 = vector.broadcast %cst : f32 to vector<8x32xf32>
    %13 = arith.select %11, %4, %12 : vector<8x32xi1>, vector<8x32xf32>
    %cst_6 = arith.constant dense<0.000000e+00> : vector<8xf32>
    %14 = vector.multi_reduction <add>, %13, %cst_6 [1] : vector<8x32xf32> to vector<8xf32>
    %15 = vector.shape_cast %14 : vector<8xf32> to vector<8x1xf32>
    %16 = arith.addf %9, %15 : vector<8x1xf32>
    %c0_7 = arith.constant 0 : index
    %c0_8 = arith.constant 0 : index
    %17 = vector.load %arg8[%c0_7, %c0_8] : memref<8x1xf32, #tpu.memory_space<vmem>>, vector<8x1xf32>
    tpu.vector_store %arg8[%c0_7, %c0_8], %16 {strides = array<i32>} : memref<8x1xf32, #tpu.memory_space<vmem>>, vector<8x1xf32>,
    %c0_9 = arith.constant 0 : index
    %c0_10 = arith.constant 0 : index
    %18 = vector.load %arg6[%c0_9, %c0_10] : memref<8x1xf32, #tpu.memory_space<vmem>>, vector<8x1xf32>
    %cst_11 = arith.constant dense<0xFF800000> : vector<8xf32>
    %19 = vector.multi_reduction <maximumf>, %4, %cst_11 [1] : vector<8x32xf32> to vector<8xf32>
    %20 = vector.shape_cast %19 : vector<8xf32> to vector<8x1xf32>
    %21 = arith.maximumf %18, %20 : vector<8x1xf32>
    %c0_12 = arith.constant 0 : index
    %c0_13 = arith.constant 0 : index
    %22 = vector.load %arg7[%c0_12, %c0_13] : memref<8x1xf32, #tpu.memory_space<vmem>>, vector<8x1xf32>
    %23 = arith.subf %18, %21 : vector<8x1xf32>
    %24 = math.exp %23 : vector<8x1xf32>
    %25 = arith.mulf %22, %24 : vector<8x1xf32>
    %26 = vector.broadcast %21 : vector<8x1xf32> to vector<8x32xf32>
    %27 = arith.subf %4, %26 : vector<8x32xf32>
    %28 = math.exp %27 : vector<8x32xf32>
    %cst_14 = arith.constant dense<0.000000e+00> : vector<8xf32>
    %29 = vector.multi_reduction <add>, %28, %cst_14 [1] : vector<8x32xf32> to vector<8xf32>
    %30 = vector.shape_cast %29 : vector<8xf32> to vector<8x1xf32>
    %31 = arith.addf %25, %30 : vector<8x1xf32>
    %c0_15 = arith.constant 0 : index
    %c0_16 = arith.constant 0 : index
    %32 = vector.load %arg7[%c0_15, %c0_16] : memref<8x1xf32, #tpu.memory_space<vmem>>, vector<8x1xf32>
    tpu.vector_store %arg7[%c0_15, %c0_16], %31 {strides = array<i32>} : memref<8x1xf32, #tpu.memory_space<vmem>>, vector<8x1xf32>,
    %c0_17 = arith.constant 0 : index
    %c0_18 = arith.constant 0 : index
    %33 = vector.load %arg6[%c0_17, %c0_18] : memref<8x1xf32, #tpu.memory_space<vmem>>, vector<8x1xf32>
    tpu.vector_store %arg6[%c0_17, %c0_18], %21 {strides = array<i32>} : memref<8x1xf32, #tpu.memory_space<vmem>>, vector<8x1xf32>,
    %c0_i32_19 = arith.constant 0 : i32
    %34 = arith.cmpi eq, %arg1, %c0_i32_19 : i32
    %35 = arith.extui %34 : i1 to i32
    %c0_i32_20 = arith.constant 0 : i32
    %36 = arith.cmpi ne, %35, %c0_i32_20 : i32
    scf.if %36 {
      %c8_i32 = arith.constant 8 : i32
      %37 = arith.muli %arg0, %c8_i32 : i32
      %38 = tpu.iota {dimensions = array<i32: 0>} : vector<8x1xi32>
      %39 = vector.broadcast %37 : i32 to vector<8x1xi32>
      %40 = arith.addi %39, %38 : vector<8x1xi32>
      %c0_21 = arith.constant 0 : index
      %c0_22 = arith.constant 0 : index
      %41 = vector.load %arg4[%c0_21, %c0_22] : memref<8x1xf32, #tpu.memory_space<vmem>>, vector<8x1xf32>
      %c0_23 = arith.constant 0 : index
      %c0_24 = arith.constant 0 : index
      %42 = vector.load %arg6[%c0_23, %c0_24] : memref<8x1xf32, #tpu.memory_space<vmem>>, vector<8x1xf32>
      %c0_25 = arith.constant 0 : index
      %c0_26 = arith.constant 0 : index
      %43 = vector.load %arg7[%c0_25, %c0_26] : memref<8x1xf32, #tpu.memory_space<vmem>>, vector<8x1xf32>
      %44 = math.log %43 : vector<8x1xf32>
      %45 = arith.addf %42, %44 : vector<8x1xf32>
      %c0_27 = arith.constant 0 : index
      %c0_28 = arith.constant 0 : index
      %46 = vector.load %arg8[%c0_27, %c0_28] : memref<8x1xf32, #tpu.memory_space<vmem>>, vector<8x1xf32>
      %47 = arith.subf %45, %46 : vector<8x1xf32>
      %48 = arith.mulf %41, %47 : vector<8x1xf32>
      %c16_i32 = arith.constant 16 : i32
      %49 = vector.broadcast %c16_i32 : i32 to vector<8x1xi32>
      %50 = arith.cmpi slt, %40, %49 : vector<8x1xi32>
      %cst_29 = arith.constant 0.000000e+00 : f32
      %51 = vector.broadcast %cst_29 : f32 to vector<8x1xf32>
      %52 = arith.select %50, %48, %51 : vector<8x1xi1>, vector<8x1xf32>
      %53 = vector.shape_cast %52 : vector<8x1xf32> to vector<1x8x1xf32>
      %cst_30 = arith.constant dense<0.000000e+00> : vector<1xf32>
      %54 = vector.multi_reduction <add>, %53, %cst_30 [1, 2] : vector<1x8x1xf32> to vector<1xf32>
      %55 = vector.shape_cast %54 : vector<1xf32> to vector<1x1x1xf32>
      %56 = vector.extract %55[0, 0, 0] : f32 from vector<1x1x1xf32>
      %57 = vector.broadcast %56 : f32 to vector<1x1xf32>
      %c0_31 = arith.constant 0 : index
      %c0_32 = arith.constant 0 : index
      %c0_33 = arith.constant 0 : index
      %58 = vector.load %arg5[%c0_31, %c0_32, %c0_33] : memref<1x1x1xf32, #tpu.memory_space<vmem>>, vector<1x1x1xf32>
      %59 = vector.shape_cast %58 : vector<1x1x1xf32> to vector<1x1xf32>
      %60 = vector.shape_cast %57 : vector<1x1xf32> to vector<1x1x1xf32>
      tpu.vector_store %arg5[%c0_31, %c0_32, %c0_33], %60 {strides = array<i32>} : memref<1x1x1xf32, #tpu.memory_space<vmem>>, vector<1x1x1xf32>,
    } else {
    }
    return
  }
  func.func @transform_0(%arg0: i32, %arg1: i32) -> (i32, i32) {
    %c0_i32 = arith.constant 0 : i32
    return %arg0, %arg1 : i32, i32
  }
  func.func @transform_1(%arg0: i32, %arg1: i32) -> (i32, i32) {
    %c0_i32 = arith.constant 0 : i32
    %c0_i32_0 = arith.constant 0 : i32
    return %arg0, %c0_i32 : i32, i32
  }
  func.func @transform_2(%arg0: i32, %arg1: i32) -> (i32, i32) {
    %c0_i32 = arith.constant 0 : i32
    %c0_i32_0 = arith.constant 0 : i32
    return %arg0, %c0_i32 : i32, i32
  }
  func.func @transform_3(%arg0: i32, %arg1: i32) -> (i32, i32, i32) {
    %c0_i32 = arith.constant 0 : i32
    %c0_i32_0 = arith.constant 0 : i32
    %c0_i32_1 = arith.constant 0 : i32
    return %arg0, %c0_i32, %c0_i32_0 : i32, i32, i32
  }
}

</mosaic_0001>

<llo_original>
// kernel: temporal_softmax_loss.1
$region0: #{temporal_softmax_loss.1}
  #allocation0 [shape = 'u32[]', space=smem, size = 0x4, offset = 0x4, fixed_abs, tag = 'smem constant byte address 0x4 - core index']
  #allocation1 [shape = 'u32[72,128]{1,0:T(1,128)}', space=vmem, size = 0x9000, scoped, tag = 'internal scratch']
  #allocation2 [shape = 'f32[8,1]{1,0:T(8,128)}', space=vmem, size = 0x1000, scoped, tag = 'scratch operand']
  #allocation3 [shape = 'f32[8,1]{1,0:T(8,128)}', space=vmem, size = 0x1000, scoped, tag = 'scratch operand']
  #allocation4 [shape = 'f32[8,1]{1,0:T(8,128)}', space=vmem, size = 0x1000, scoped, tag = 'scratch operand']
  %s0 = inlined_call_operand.vmem [shape: f32[16,32], index: 0, kind: input, shape index: {}]
  %s1 = inlined_call_operand.vmem [shape: s32[16,1], index: 1, kind: input, shape index: {}]
  %s2 = inlined_call_operand.vmem [shape: f32[16,1], index: 2, kind: input, shape index: {}]
  %s3 = inlined_call_operand.vmem [shape: f32[2,1,1], index: 3, kind: output, shape index: {}]
  %s4 = sld [smem:[#allocation0]]
  $region53: #{temporal_softmax_loss.1} parent=0
    _
  %s6 = ssub.s32 1, %s4
  %s7 = scalar_select 0, %s6, %s4
  loop: start=0, step=1, limit=4
  $region2: #{temporal_softmax_loss.1} parent=0 // loop_pre_header
    _
  $region3: #{temporal_softmax_loss.1} parent=0 // loop_header
    %s9 = sphi 0, %s13
    %p10 = scmp.ge.s32.totalorder %s9, 4
    %s16 = sphi 0, %s28
    %s17 = sphi 0, %s24
    %s18 = sphi 0, %s16
    %s19 = sphi 0, %s17
    %s20 = sphi 0, %s18
    %s21 = sphi 0, %s19
    %s33 = sphi 0, %s35
    %s36 = sphi 0, %s33
    %s37 = sphi 0, %s36
    %s53 = sphi 0, %s37
    %s59 = sphi 0, %s61
    %s62 = sphi 0, %s59
    %s63 = sphi 0, %s62
    %s79 = sphi 0, %s63
    %s85 = sphi 0, %s87
    %s88 = sphi 0, %s85
    %s89 = sphi 0, %s88
    %s105 = sphi 0, %s89
    %s111 = sphi 0, %s113
    %s114 = sphi 0, %s111
    %s115 = sphi 0, %s114
    %s131 = sphi 0, %s115
  $region4: #{temporal_softmax_loss.1} parent=0 // loop_header_branch
    %12 = sbr.rel (%p10) target = $region8
  $region5: #{temporal_softmax_loss.1} parent=0 // loop_body
    %s14 = ssub.s32 %s9, 1
    %s15 = ssub.s32 %s9, 2
    %s22 = sadd.s32 1, %s17
    %p23 = scmp.ge.s32.totalorder %s22, 1
    %s24 = scalar_select %p23, 0, %s22
    %s25 = sadd.s32 1, %s16
    %s26 = scalar_select %p23, %s25, %s16
    %p27 = scmp.ge.s32.totalorder %s26, 2
    %s28 = scalar_select %p27, 0, %s26
    %s29 = ssub.s32 %s16, %s28
    %s30 = ssub.s32 %s17, %s24
    %s31 = sor.u32 %s29, %s30
    %p32 = scmp.eq.s32.totalorder %s31, 0
    %s34 = sadd.s32 %s33, 1
    %s35 = scalar_select %p32, %s33, %s34
    %p38 = pneg %p32
    %p39 = scmp.eq.s32.totalorder %s9, 1
    %p40 = por %p38, %p39
    %p41 = scmp.ne.s32.totalorder %s33, %s36
    %p42 = scmp.eq.s32.totalorder %s9, 0
    %p43 = por %p41, %p42
    %p44 = scmp.ne.s32.totalorder %s33, %s36
    %p45 = scmp.eq.s32.totalorder %s14, 1
    %p46 = por %p44, %p45
    %p47 = scmp.ne.s32.totalorder %s36, %s37
    %p48 = scmp.eq.s32.totalorder %s14, 0
    %p49 = por %p47, %p48
    %p50 = scmp.ne.s32.totalorder %s36, %s37
    %p51 = scmp.eq.s32.totalorder %s15, 1
    %p52 = por %p50, %p51
    %p54 = scmp.ne.s32.totalorder %s37, %s53
    %p55 = scmp.eq.s32.totalorder %s15, 0
    %p56 = por %p54, %p55
    %s57 = ssub.s32 %s16, %s28
    %p58 = scmp.eq.s32.totalorder %s57, 0
    %s60 = sadd.s32 %s59, 1
    %s61 = scalar_select %p58, %s59, %s60
    %p64 = pneg %p58
    %p65 = scmp.eq.s32.totalorder %s9, 1
    %p66 = por %p64, %p65
    %p67 = scmp.ne.s32.totalorder %s59, %s62
    %p68 = scmp.eq.s32.totalorder %s9, 0
    %p69 = por %p67, %p68
    %p70 = scmp.ne.s32.totalorder %s59, %s62
    %p71 = scmp.eq.s32.totalorder %s14, 1
    %p72 = por %p70, %p71
    %p73 = scmp.ne.s32.totalorder %s62, %s63
    %p74 = scmp.eq.s32.totalorder %s14, 0
    %p75 = por %p73, %p74
    %p76 = scmp.ne.s32.totalorder %s62, %s63
    %p77 = scmp.eq.s32.totalorder %s15, 1
    %p78 = por %p76, %p77
    %p80 = scmp.ne.s32.totalorder %s63, %s79
    %p81 = scmp.eq.s32.totalorder %s15, 0
    %p82 = por %p80, %p81
    %s83 = ssub.s32 %s16, %s28
    %p84 = scmp.eq.s32.totalorder %s83, 0
    %s86 = sadd.s32 %s85, 1
    %s87 = scalar_select %p84, %s85, %s86
    %p90 = pneg %p84
    %p91 = scmp.eq.s32.totalorder %s9, 1
    %p92 = por %p90, %p91
    %p93 = scmp.ne.s32.totalorder %s85, %s88
    %p94 = scmp.eq.s32.totalorder %s9, 0
    %p95 = por %p93, %p94
    %p96 = scmp.ne.s32.totalorder %s85, %s88
    %p97 = scmp.eq.s32.totalorder %s14, 1
    %p98 = por %p96, %p97
    %p99 = scmp.ne.s32.totalorder %s88, %s89
    %p100 = scmp.eq.s32.totalorder %s14, 0
    %p101 = por %p99, %p100
    %p102 = scmp.ne.s32.totalorder %s88, %s89
    %p103 = scmp.eq.s32.totalorder %s15, 1
    %p104 = por %p102, %p103
    %p106 = scmp.ne.s32.totalorder %s89, %s105
    %p107 = scmp.eq.s32.totalorder %s15, 0
    %p108 = por %p106, %p107
    %s109 = ssub.s32 %s16, %s28
    %p110 = scmp.eq.s32.totalorder %s109, 0
    %s112 = sadd.s32 %s111, 1
    %s113 = scalar_select %p110, %s111, %s112
    %p116 = pneg %p110
    %p117 = scmp.eq.s32.totalorder %s9, 1
    %p118 = por %p116, %p117
    %p119 = scmp.ne.s32.totalorder %s111, %s114
    %p120 = scmp.eq.s32.totalorder %s9, 0
    %p121 = por %p119, %p120
    %p122 = scmp.ne.s32.totalorder %s111, %s114
    %p123 = scmp.eq.s32.totalorder %s14, 1
    %p124 = por %p122, %p123
    %p125 = scmp.ne.s32.totalorder %s114, %s115
    %p126 = scmp.eq.s32.totalorder %s14, 0
    %p127 = por %p125, %p126
    %p128 = scmp.ne.s32.totalorder %s114, %s115
    %p129 = scmp.eq.s32.totalorder %s15, 1
    %p130 = por %p128, %p129
    %p132 = scmp.ne.s32.totalorder %s115, %s131
    %p133 = scmp.eq.s32.totalorder %s15, 0
    %p134 = por %p132, %p133
    %p135 = scmp.le.s32.totalorder 1, %s9
    %p136 = scmp.lt.s32.totalorder %s9, 3
    %p137 = pnand %p135, %p136
    %p138 = pneg %p137
    // Predicated region
    $region9: #{temporal_softmax_loss.1} parent=5 // pred_check
      _
    $region10: #{temporal_softmax_loss.1} parent=5 // pred_check_branch
      %140 = sbr.rel (%p137) target = $region12
    $region11: #{temporal_softmax_loss.1} parent=5 // pred_region
      %s141 = ssub.s32 %s9, 1
    $region12: #{temporal_softmax_loss.1} parent=5 // pred_fallthru
      _
    %p142 = scmp.lt.s32.totalorder %s9, 2
    // Predicated region
    $region13: #{temporal_softmax_loss.1} parent=5 // pred_check
      %p143 = pneg %p142
    $region14: #{temporal_softmax_loss.1} parent=5 // pred_check_branch
      %145 = sbr.rel (%p143) target = $region16
    $region15: #{temporal_softmax_loss.1} parent=5 // pred_region
      // Predicated region
      $region17: #{temporal_softmax_loss.1} parent=15 // pred_check
        %p146 = pneg %p43
      $region18: #{temporal_softmax_loss.1} parent=15 // pred_check_branch
        %148 = sbr.rel (%p146) target = $region20
      $region19: #{temporal_softmax_loss.1} parent=15 // pred_region
        %p149 = scmp.lt.s32.totalorder %s16, 1
        %s150 = scalar_select %p149, %s16, 1
        %p151 = scmp.lt.s32.totalorder %s17, 0
        %s152 = scalar_select %p151, %s17, 0
        %s153 = sadd.s32 %s152, %s150
        %s154 = smul.addr %s153, 8
        %s155 = scalar_lea.vmem %s0, %s154
      $region20: #{temporal_softmax_loss.1} parent=15 // pred_fallthru
        _
      // Predicated region
      $region21: #{temporal_softmax_loss.1} parent=15 // pred_check
        %p156 = pneg %p69
      $region22: #{temporal_softmax_loss.1} parent=15 // pred_check_branch
        %158 = sbr.rel (%p156) target = $region24
      $region23: #{temporal_softmax_loss.1} parent=15 // pred_region
        %p159 = scmp.lt.s32.totalorder %s16, 1
        %s160 = scalar_select %p159, %s16, 1
        %s161 = smul.addr %s160, 8
        %s162 = scalar_lea.vmem %s1, %s161
      $region24: #{temporal_softmax_loss.1} parent=15 // pred_fallthru
        _
      // Predicated region
      $region25: #{temporal_softmax_loss.1} parent=15 // pred_check
        %p163 = pneg %p95
      $region26: #{temporal_softmax_loss.1} parent=15 // pred_check_branch
        %165 = sbr.rel (%p163) target = $region28
      $region27: #{temporal_softmax_loss.1} parent=15 // pred_region
        %p166 = scmp.lt.s32.totalorder %s16, 1
        %s167 = scalar_select %p166, %s16, 1
        %s168 = smul.addr %s167, 8
        %s169 = scalar_lea.vmem %s2, %s168
      $region28: #{temporal_softmax_loss.1} parent=15 // pred_fallthru
        _
    $region16: #{temporal_softmax_loss.1} parent=5 // pred_fallthru
      _
    %p170 = scmp.le.s32.totalorder 1, %s9
    %p171 = scmp.lt.s32.totalorder %s9, 3
    %p172 = pnand %p170, %p171
    %p173 = pneg %p172
    // Predicated region
    $region29: #{temporal_softmax_loss.1} parent=5 // pred_check
      _
    $region30: #{temporal_softmax_loss.1} parent=5 // pred_check_branch
      %175 = sbr.rel (%p172) target = $region32
    $region31: #{temporal_softmax_loss.1} parent=5 // pred_region
      %s176 = ssub.s32 %s9, 1
      %p177 = scmp.lt.s32.totalorder %s18, 1
      %s178 = scalar_select %p177, %s18, 1
      %p179 = scmp.lt.s32.totalorder %s19, 0
      %s180 = scalar_select %p179, %s19, 0
      %s181 = sadd.s32 %s180, %s178
      %s182 = smul.addr %s181, 8
      %s183 = scalar_lea.vmem %s0, %s182
      %p184 = pneg %p49
      %p185 = pneg %p46
      %p186 = scmp.lt.s32.totalorder %s18, 1
      %s187 = scalar_select %p186, %s18, 1
      %s188 = smul.addr %s187, 8
      %s189 = scalar_lea.vmem %s1, %s188
      %p190 = pneg %p75
      %p191 = pneg %p72
      %p192 = scmp.lt.s32.totalorder %s18, 1
      %s193 = scalar_select %p192, %s18, 1
      %s194 = smul.addr %s193, 8
      %s195 = scalar_lea.vmem %s2, %s194
      %p196 = pneg %p101
      %p197 = pneg %p98
      %p198 = pneg %p127
      %p199 = pneg %p124
      %p200 = scmp.lt.s32.totalorder %s18, 1
      %s201 = scalar_select %p200, %s18, 1
      %s202 = scalar_lea.vmem %s3, %s201
      %p203 = scmp.lt.s32.totalorder %s18, 1
      %s204 = scalar_select %p203, %s18, 1
      %p205 = scmp.lt.s32.totalorder %s19, 0
      %s206 = scalar_select %p205, %s19, 0
      %s207 = sadd.s32 %s206, %s204
      %s208 = smul.addr %s207, 8
      %s209 = scalar_lea.vmem %s0, %s208
      %p210 = scmp.lt.s32.totalorder %s18, 1
      %s211 = scalar_select %p210, %s18, 1
      %s212 = smul.addr %s211, 8
      %s213 = scalar_lea.vmem %s1, %s212
      %p214 = scmp.lt.s32.totalorder %s18, 1
      %s215 = scalar_select %p214, %s18, 1
      %s216 = smul.addr %s215, 8
      %s217 = scalar_lea.vmem %s2, %s216
      %p218 = scmp.lt.s32.totalorder %s18, 1
      %s219 = scalar_select %p218, %s18, 1
      %s220 = scalar_lea.vmem %s3, %s219
      %p221 = scmp.eq.s32.totalorder %s19, 0
      // Predicated region
      $region33: #{temporal_softmax_loss.1} parent=31 // pred_check
        %p222 = pneg %p221
      $region34: #{temporal_softmax_loss.1} parent=31 // pred_check_branch
        %224 = sbr.rel (%p222) target = $region36
      $region35: #{temporal_softmax_loss.1} parent=31 // pred_region
        %vm225 = vcmask 7168
        %226 = vst.msk [vmem:[#allocation2] sm:$0xff] %vm225, -inf
        %227 = vst.msk [vmem:[#allocation3] sm:$0xff] %vm225, 0.0
        %228 = vst.msk [vmem:[#allocation4] sm:$0xff] %vm225, 0.0
      $region36: #{temporal_softmax_loss.1} parent=31 // pred_fallthru
        _
      %v229 = vlaneseq
      %v230 = vand.u32 %v229, 127
      %v231 = vld [vmem:[%s209] sm:$0xff]
      %v232 = vld [vmem:[%s213] sm:$0xff]
      %s233 = smul.u32 %s19, 32
      %v234 = vstv %s233
      %v235 = vsub.s32 %v232, %v234
      %v236 = vld [vmem:[#allocation4] sm:$0xff]
      %237 = vset.pattern.permute.xlu0 0
      %238 = vperm.xlu0 %237, %v235
      %v239 = vpop.permute.xlu0 %238
      %vm240 = vcmp.eq.s32.totalorder %v230, %v239
      %v241 = vsel %vm240, %v231, 0.0
      %vm242 = vcmask 261120
      %v243 = vsel %vm242, %v241, 0.0
      %244 = vadd.xlane.f32.xlu0 %v243
      %v245 = vpop.xlane.xlu0 %244
      %v246 = vadd.f32 %v236, %v245
      %vm247 = vcmask 7168
      %248 = vst.msk [vmem:[#allocation4] sm:$0xff] %vm247, %v246
      %v249 = vld [vmem:[#allocation2] sm:$0xff]
      %v250 = vsel %vm242, %v231, -inf
      %251 = vmax.xlane.f32.xlu0 %v250
      %v252 = vpop.xlane.xlu0 %251
      %v253 = vmax.f32 %v249, %v252
      %v254 = vld [vmem:[#allocation3] sm:$0xff]
      %v255 = vsub.f32 %v249, %v253
      %v256 = vmul.f32 %v255, 1.442695
      %v257 = vpow.pop %v256
      %v258 = vmul.f32 %v254, %v257
      %260 = vset.pattern.permute.xlu0 0
      %261 = vperm.xlu0 %260, %v253
      %v262 = vpop.permute.xlu0 %261
      %v264 = vsub.f32 %v231, %v262
      %v265 = vmul.f32 %v264, 1.442695
      %v266 = vpow.pop %v265
      %v267 = vsel %vm242, %v266, 0.0
      %268 = vadd.xlane.f32.xlu0 %v267
      %v269 = vpop.xlane.xlu0 %268
      %v270 = vadd.f32 %v258, %v269
      %271 = vst.msk [vmem:[#allocation3] sm:$0xff] %vm247, %v270
      %272 = vst.msk [vmem:[#allocation2] sm:$0xff] %vm247, %v253
      // Predicated region
      $region37: #{temporal_softmax_loss.1} parent=31 // pred_check
        %p273 = pneg %p221
      $region38: #{temporal_softmax_loss.1} parent=31 // pred_check_branch
        %275 = sbr.rel (%p273) target = $region40
      $region39: #{temporal_softmax_loss.1} parent=31 // pred_region
        %s276 = smul.u32 %s18, 8
        %v277 = vlaneseq
        %v278 = vshrl.u32 %v277, 7
        %v279 = vstv %s276
        %v280 = vadd.s32 %v279, %v278
        %v281 = vld [vmem:[%s217] sm:$0xff]
        %v282 = vld [vmem:[#allocation2] sm:$0xff]
        %v283 = vld [vmem:[#allocation3] sm:$0xff]
        %v284 = vlog2.pop %v283
        %v285 = vmul.f32 %v284, 0.6931472
        %v286 = vadd.f32 %v282, %v285
        %v287 = vld [vmem:[#allocation4] sm:$0xff]
        %v288 = vsub.f32 %v286, %v287
        %v289 = vmul.f32 %v281, %v288
        %vm290 = vcmp.lt.s32.totalorder %v280, 16
        %v291 = vsel %vm290, %v289, 0.0
        %v292 = vsel %vm247, %v291, 0.0
        %293 = vadd.xlane.f32.xlu0 %v292
        %v294 = vpop.xlane.xlu0 %293
        %v295 = vrot.slane %v294, 4
        %v296 = vadd.f32 %v294, %v295
        %v297 = vrot.slane %v296, 2
        %v298 = vadd.f32 %v296, %v297
        %v299 = vrot.slane %v298, 1
        %v300 = vadd.f32 %v298, %v299
        %s301 = vtos %v300
        %v302 = vstv %s301
        %vm303 = vcmask 0
        %304 = vst.msk [vmem:[%s220] sm:$0x1] %vm303, %v302
      $region40: #{temporal_softmax_loss.1} parent=31 // pred_fallthru
        _
      %p305 = scmp.lt.s32.totalorder %s18, 1
      %s306 = scalar_select %p305, %s18, 1
      %s307 = scalar_lea.vmem %s3, %s306
      // Predicated region
      $region41: #{temporal_softmax_loss.1} parent=31 // pred_check
        %p308 = pneg %p124
      $region42: #{temporal_softmax_loss.1} parent=31 // pred_check_branch
        %310 = sbr.rel (%p308) target = $region44
      $region43: #{temporal_softmax_loss.1} parent=31 // pred_region
        _
      $region44: #{temporal_softmax_loss.1} parent=31 // pred_fallthru
        _
    $region32: #{temporal_softmax_loss.1} parent=5 // pred_fallthru
      _
    %p311 = scmp.le.s32.totalorder 2, %s9
    // Predicated region
    $region45: #{temporal_softmax_loss.1} parent=5 // pred_check
      %p312 = pneg %p311
    $region46: #{temporal_softmax_loss.1} parent=5 // pred_check_branch
      %314 = sbr.rel (%p312) target = $region48
    $region47: #{temporal_softmax_loss.1} parent=5 // pred_region
      %s315 = ssub.s32 %s9, 2
      // Predicated region
      $region49: #{temporal_softmax_loss.1} parent=47 // pred_check
        %p316 = pneg %p130
      $region50: #{temporal_softmax_loss.1} parent=47 // pred_check_branch
        %318 = sbr.rel (%p316) target = $region52
      $region51: #{temporal_softmax_loss.1} parent=47 // pred_region
        %p319 = scmp.lt.s32.totalorder %s20, 1
        %s320 = scalar_select %p319, %s20, 1
        %s321 = scalar_lea.vmem %s3, %s320
      $region52: #{temporal_softmax_loss.1} parent=47 // pred_fallthru
        _
    $region48: #{temporal_softmax_loss.1} parent=5 // pred_fallthru
      _
  $region6: #{temporal_softmax_loss.1} parent=0 // loop_footer
    %s13 = sadd.s32 1, %s9
  $region7: #{temporal_softmax_loss.1} parent=0 // loop_footer_branch
    %8 = sbr.rel target = $region3
  $region8: #{temporal_softmax_loss.1} parent=0 // loop_exit
    _

</llo_original>
